<compile_context>
chip_gen: v7x
topology: tpu7x:2x2x1
jax: 0.10.0
libtpu: 0.0.40
codegen_flags: <defaults>
</compile_context>

<pallas_src>
import jax
import jax.numpy as jnp
from jax.experimental import pallas as pl
from jax.experimental.pallas import tpu as pltpu


_SUB = 8  # f32 sublane granularity


def _round_up(x, m):
    return (x + m - 1) // m * m


def _choose_batch_tiling(B, batch_tile):
    """Pick (padded_batch, tile): sublane-aligned tiles, no mostly-zero tail tile,
    and >=2 grid steps for training-sized batches so v7x's two TCs both work."""
    B_p = _round_up(B, _SUB)
    cap = min(_round_up(batch_tile, _SUB), B_p)
    if B_p >= 2 * _SUB:
        cap = min(cap, _round_up(pl.cdiv(B_p, 2), _SUB))
    cap = max(cap, _SUB)
    # Prefer a tile that divides the padded batch exactly (no wasted tail work).
    tb = cap
    while tb > _SUB and B_p % tb != 0:
        tb -= _SUB
    # If the only exact divisor is tiny, accept a small padded tail instead.
    if B_p % tb != 0 or tb < max(_SUB, cap // 4):
        tb = cap
        B_p = _round_up(B_p, tb)
    return B_p, tb


def _mlp_kernel(x_ref, w1_ref, b1_ref, w2_ref, b2_ref, o_ref):
    # Layer 1 on the MXU with f32 accumulation; bias add + ReLU on the VPU.
    h = jnp.dot(x_ref[...], w1_ref[...], preferred_element_type=jnp.float32)
    h = jnp.maximum(h + b1_ref[...], 0.0)                   # (TB, H) + (1, H)
    # Layer 2: hidden activations never leave vregs; cast only for MXU input dtype.
    y = jnp.dot(h.astype(w2_ref.dtype), w2_ref[...],
                preferred_element_type=jnp.float32)
    y = y + b2_ref[...]                                     # (TB, A) + (1, A)
    o_ref[...] = y.astype(o_ref.dtype)


def nnet_forward(x, w1, b1, w2, b2, *, batch_tile=512, compute_dtype=None):
    """Forward pass of NNet as one Pallas TPU kernel.

    x  : (B, state_dim)            float32
    w1 : (state_dim, hidden_dim)   (PyTorch weight transposed)
    b1 : (hidden_dim,) or (1, hidden_dim)
    w2 : (hidden_dim, actions_dim)
    b2 : (actions_dim,) or (1, actions_dim)
    compute_dtype: optionally jnp.bfloat16 for MXU inputs on v5e/v6e.
    returns (B, actions_dim) float32
    """
    B, S = x.shape
    H = w1.shape[1]
    A = w2.shape[1]

    if b1.ndim == 1:
        b1 = b1.reshape(1, H)
    if b2.ndim == 1:
        b2 = b2.reshape(1, A)

    if compute_dtype is not None:
        x = x.astype(compute_dtype)
        w1 = w1.astype(compute_dtype)
        w2 = w2.astype(compute_dtype)
    out_dtype = jnp.float32

    B_p, TB = _choose_batch_tiling(B, batch_tile)
    if B_p != B:
        x = jnp.pad(x, ((0, B_p - B), (0, 0)))  # only sublane/tail rows, sliced off

    grid = (B_p // TB,)

    itm = x.dtype.itemsize
    cost = pl.CostEstimate(
        flops=2 * B * (S * H + H * A),
        transcendentals=0,
        bytes_accessed=(B * S * itm
                        + (S * H + H * A) * itm
                        + (H + A) * b1.dtype.itemsize
                        + B * A * jnp.dtype(out_dtype).itemsize),
    )

    out = pl.pallas_call(
        _mlp_kernel,
        out_shape=jax.ShapeDtypeStruct((B_p, A), out_dtype),
        grid=grid,
        in_specs=[
            # x: tiled over batch; trailing dim is the full (unpadded) state dim.
            pl.BlockSpec((TB, S), lambda i: (i, 0)),
            # Weights / biases: full-array blocks with constant block index ->
            # DMA'd once and VMEM-resident across all batch tiles.
            pl.BlockSpec((S, H), lambda i: (0, 0)),
            pl.BlockSpec((1, H), lambda i: (0, 0)),
            pl.BlockSpec((H, A), lambda i: (0, 0)),
            pl.BlockSpec((1, A), lambda i: (0, 0)),
        ],
        # Narrow (A-wide) output block: masked store per tile beats 64x padded
        # writeback + a slice kernel for a 2-wide DQN head.
        out_specs=pl.BlockSpec((TB, A), lambda i: (i, 0)),
        compiler_params=pltpu.CompilerParams(
            # Batch tiles are independent -> megacore-shard on v7x (no-op v5e/v6e).
            dimension_semantics=("parallel",),
        ),
        cost_estimate=cost,
    )(x, w1, b1, w2, b2)

    return out if B_p == B else out[:B]


def init_params(key, state_dim, actions_dim, hidden_dim):
    """Deterministic init mimicking PyTorch nn.Linear default
    (uniform(-1/sqrt(fan_in), 1/sqrt(fan_in))), stored as [in, out]; biases are
    stored as (1, dim) so the hot forward path needs no per-call reshapes/pads."""
    k1, k2, k3, k4 = jax.random.split(key, 4)
    bound1 = 1.0 / jnp.sqrt(jnp.float32(state_dim))
    bound2 = 1.0 / jnp.sqrt(jnp.float32(hidden_dim))
    w1 = jax.random.uniform(k1, (state_dim, hidden_dim), jnp.float32,
                            -bound1, bound1)
    b1 = jax.random.uniform(k2, (1, hidden_dim), jnp.float32, -bound1, bound1)
    w2 = jax.random.uniform(k3, (hidden_dim, actions_dim), jnp.float32,
                            -bound2, bound2)
    b2 = jax.random.uniform(k4, (1, actions_dim), jnp.float32, -bound2, bound2)
    return w1, b1, w2, b2


if __name__ == "__main__":
    # DQN-like shapes (CartPole-ish) with a replay-sized batch: exercises the
    # 2-step parallel batch grid (2 x 128) plus a tiny unaligned greedy call.
    batch, state_dim, actions_dim, hidden_dim = 256, 4, 2, 32

    key = jax.random.PRNGKey(0)
    kx, kp = jax.random.split(key)
    x = jax.random.normal(kx, (batch, state_dim), jnp.float32)
    w1, b1, w2, b2 = init_params(kp, state_dim, actions_dim, hidden_dim)

    out = jax.block_until_ready(nnet_forward(x, w1, b1, w2, b2))

    # Pure-JAX reference check.
    ref = jnp.maximum(x @ w1 + b1, 0.0) @ w2 + b2
    assert out.shape == (batch, actions_dim)
    assert jnp.allclose(out, ref, atol=1e-5, rtol=1e-5)

    # Tiny / non-sublane-aligned batch (greedy-action style call) still works.
    out_small = jax.block_until_ready(nnet_forward(x[:3], w1, b1, w2, b2))
    assert out_small.shape == (3, actions_dim)
    assert jnp.allclose(out_small, ref[:3], atol=1e-5, rtol=1e-5)

    print("KERNEL_OK")
</pallas_src>

<mosaic_0001>
module attributes {stable_mosaic.version = 11 : i64} {
  func.func @_mlp_kernel(%arg0: i32, %arg1: memref<128x4xf32, #tpu.memory_space<vmem>>, %arg2: memref<4x32xf32, #tpu.memory_space<vmem>>, %arg3: memref<1x32xf32, #tpu.memory_space<vmem>>, %arg4: memref<32x2xf32, #tpu.memory_space<vmem>>, %arg5: memref<1x2xf32, #tpu.memory_space<vmem>>, %arg6: memref<128x2xf32, #tpu.memory_space<vmem>>) attributes {dimension_semantics = [#tpu.dimension_semantics<parallel>], iteration_bounds = array<i64: 2>, scalar_prefetch = 0 : i64, scratch_operands = 0 : i64, tpu.core_type = #tpu.core_type<tc>, window_params = [{transform_indices = @transform_0, window_bounds = array<i64: 128, 4>}, {pipeline_mode = #tpu.pipeline_mode<synchronous>, transform_indices = @transform_1, window_bounds = array<i64: 4, 32>}, {pipeline_mode = #tpu.pipeline_mode<synchronous>, transform_indices = @transform_2, window_bounds = array<i64: 1, 32>}, {pipeline_mode = #tpu.pipeline_mode<synchronous>, transform_indices = @transform_3, window_bounds = array<i64: 32, 2>}, {pipeline_mode = #tpu.pipeline_mode<synchronous>, transform_indices = @transform_4, window_bounds = array<i64: 1, 2>}, {transform_indices = @transform_5, window_bounds = array<i64: 128, 2>}]} {
    %c0 = arith.constant 0 : index
    %c0_0 = arith.constant 0 : index
    %0 = vector.load %arg1[%c0, %c0_0] : memref<128x4xf32, #tpu.memory_space<vmem>>, vector<128x4xf32>
    %c0_1 = arith.constant 0 : index
    %c0_2 = arith.constant 0 : index
    %1 = vector.load %arg2[%c0_1, %c0_2] : memref<4x32xf32, #tpu.memory_space<vmem>>, vector<4x32xf32>
    %cst = arith.constant dense<0.000000e+00> : vector<128x32xf32>
    %2 = tpu.matmul %0, %1, %cst {dimension_numbers = #tpu.dot_dimension_numbers<[1], [0], [0], [1], [0, 0, 1, 1], [], []>} : vector<128x4xf32>, vector<4x32xf32>, vector<128x32xf32> -> vector<128x32xf32>
    %c0_3 = arith.constant 0 : index
    %c0_4 = arith.constant 0 : index
    %3 = vector.load %arg3[%c0_3, %c0_4] : memref<1x32xf32, #tpu.memory_space<vmem>>, vector<1x32xf32>
    %4 = vector.broadcast %3 : vector<1x32xf32> to vector<128x32xf32>
    %5 = arith.addf %2, %4 : vector<128x32xf32>
    %cst_5 = arith.constant 0.000000e+00 : f32
    %6 = vector.broadcast %cst_5 : f32 to vector<128x32xf32>
    %7 = arith.maximumf %5, %6 : vector<128x32xf32>
    %c0_6 = arith.constant 0 : index
    %c0_7 = arith.constant 0 : index
    %8 = vector.load %arg4[%c0_6, %c0_7] : memref<32x2xf32, #tpu.memory_space<vmem>>, vector<32x2xf32>
    %cst_8 = arith.constant dense<0.000000e+00> : vector<128x2xf32>
    %9 = tpu.matmul %7, %8, %cst_8 {dimension_numbers = #tpu.dot_dimension_numbers<[1], [0], [0], [1], [0, 0, 1, 1], [], []>} : vector<128x32xf32>, vector<32x2xf32>, vector<128x2xf32> -> vector<128x2xf32>
    %c0_9 = arith.constant 0 : index
    %c0_10 = arith.constant 0 : index
    %10 = vector.load %arg5[%c0_9, %c0_10] : memref<1x2xf32, #tpu.memory_space<vmem>>, vector<1x2xf32>
    %11 = vector.broadcast %10 : vector<1x2xf32> to vector<128x2xf32>
    %12 = arith.addf %9, %11 : vector<128x2xf32>
    %c0_11 = arith.constant 0 : index
    %c0_12 = arith.constant 0 : index
    %13 = vector.load %arg6[%c0_11, %c0_12] : memref<128x2xf32, #tpu.memory_space<vmem>>, vector<128x2xf32>
    tpu.vector_store %arg6[%c0_11, %c0_12], %12 {strides = array<i32>} : memref<128x2xf32, #tpu.memory_space<vmem>>, vector<128x2xf32>,
    return
  }
  func.func @transform_0(%arg0: i32) -> (i32, i32) {
    %c0_i32 = arith.constant 0 : i32
    %c0_i32_0 = arith.constant 0 : i32
    return %arg0, %c0_i32 : i32, i32
  }
  func.func @transform_1(%arg0: i32) -> (i32, i32) {
    %c0_i32 = arith.constant 0 : i32
    %c0_i32_0 = arith.constant 0 : i32
    %c0_i32_1 = arith.constant 0 : i32
    return %c0_i32, %c0_i32_0 : i32, i32
  }
  func.func @transform_2(%arg0: i32) -> (i32, i32) {
    %c0_i32 = arith.constant 0 : i32
    %c0_i32_0 = arith.constant 0 : i32
    %c0_i32_1 = arith.constant 0 : i32
    return %c0_i32, %c0_i32_0 : i32, i32
  }
  func.func @transform_3(%arg0: i32) -> (i32, i32) {
    %c0_i32 = arith.constant 0 : i32
    %c0_i32_0 = arith.constant 0 : i32
    %c0_i32_1 = arith.constant 0 : i32
    return %c0_i32, %c0_i32_0 : i32, i32
  }
  func.func @transform_4(%arg0: i32) -> (i32, i32) {
    %c0_i32 = arith.constant 0 : i32
    %c0_i32_0 = arith.constant 0 : i32
    %c0_i32_1 = arith.constant 0 : i32
    return %c0_i32, %c0_i32_0 : i32, i32
  }
  func.func @transform_5(%arg0: i32) -> (i32, i32) {
    %c0_i32 = arith.constant 0 : i32
    %c0_i32_0 = arith.constant 0 : i32
    return %arg0, %c0_i32 : i32, i32
  }
}

</mosaic_0001>

<llo_original>
// kernel: tpu_custom_call.1
$region0: #{tpu_custom_call.1}
  #allocation0 [shape = 'u32[]', space=smem, size = 0x4, offset = 0x4, fixed_abs, tag = 'smem constant byte address 0x4 - core index']
  #allocation1 [shape = 'u32[144,128]{1,0:T(1,128)}', space=vmem, size = 0x12000, scoped, tag = 'internal scratch']
  %s0 = inlined_call_operand.vmem [shape: f32[256,4], index: 0, kind: input, shape index: {}]
  %s1 = inlined_call_operand.vmem [shape: f32[4,32], index: 1, kind: input, shape index: {}]
  %s2 = inlined_call_operand.vmem [shape: f32[1,32], index: 2, kind: input, shape index: {}]
  %s3 = inlined_call_operand.vmem [shape: f32[32,2], index: 3, kind: input, shape index: {}]
  %s4 = inlined_call_operand.vmem [shape: f32[1,2], index: 4, kind: input, shape index: {}]
  %s5 = inlined_call_operand.vmem [shape: f32[256,2], index: 5, kind: output, shape index: {}]
  %s6 = sld [smem:[#allocation0]]
  $region53: #{tpu_custom_call.1} parent=0
    _
  %s8 = ssub.s32 1, %s6
  %s9 = scalar_select 0, %s8, %s6
  loop: start=0, step=1, limit=4
  $region2: #{tpu_custom_call.1} parent=0 // loop_pre_header
    _
  $region3: #{tpu_custom_call.1} parent=0 // loop_header
    %s11 = sphi 0, %s15
    %p12 = scmp.ge.s32.totalorder %s11, 4
    %s21 = sphi 0, %s23
    %s24 = sphi 0, %s21
    %s25 = sphi 0, %s24
    %s41 = sphi 0, %s25
    %s45 = sphi 0, %s45
    %s47 = sphi 0, %s45
    %s48 = sphi 0, %s47
    %s62 = sphi 0, %s48
    %s66 = sphi 0, %s66
    %s68 = sphi 0, %s66
    %s69 = sphi 0, %s68
    %s83 = sphi 0, %s69
    %s87 = sphi 0, %s87
    %s89 = sphi 0, %s87
    %s90 = sphi 0, %s89
    %s104 = sphi 0, %s90
    %s108 = sphi 0, %s108
    %s110 = sphi 0, %s108
    %s111 = sphi 0, %s110
    %s125 = sphi 0, %s111
    %s131 = sphi 0, %s133
    %s134 = sphi 0, %s131
    %s135 = sphi 0, %s134
    %s151 = sphi 0, %s135
  $region4: #{tpu_custom_call.1} parent=0 // loop_header_branch
    %14 = sbr.rel (%p12) target = $region8
  $region5: #{tpu_custom_call.1} parent=0 // loop_body
    %s16 = ssub.s32 %s11, 1
    %s17 = ssub.s32 %s11, 2
    %s18 = sadd.s32 %s11, 1
    %s19 = ssub.s32 %s11, %s18
    %p20 = scmp.eq.s32.totalorder %s19, 0
    %s22 = sadd.s32 %s21, 1
    %s23 = scalar_select %p20, %s21, %s22
    %p26 = pneg %p20
    %p27 = scmp.eq.s32.totalorder %s11, 1
    %p28 = por %p26, %p27
    %p29 = scmp.ne.s32.totalorder %s21, %s24
    %p30 = scmp.eq.s32.totalorder %s11, 0
    %p31 = por %p29, %p30
    %p32 = scmp.ne.s32.totalorder %s21, %s24
    %p33 = scmp.eq.s32.totalorder %s16, 1
    %p34 = por %p32, %p33
    %p35 = scmp.ne.s32.totalorder %s24, %s25
    %p36 = scmp.eq.s32.totalorder %s16, 0
    %p37 = por %p35, %p36
    %p38 = scmp.ne.s32.totalorder %s24, %s25
    %p39 = scmp.eq.s32.totalorder %s17, 1
    %p40 = por %p38, %p39
    %p42 = scmp.ne.s32.totalorder %s25, %s41
    %p43 = scmp.eq.s32.totalorder %s17, 0
    %p44 = por %p42, %p43
    %s46 = sadd.s32 %s45, 1
    %p49 = scmp.eq.s32.totalorder %s11, 1
    %p50 = scmp.ne.s32.totalorder %s45, %s47
    %p51 = scmp.eq.s32.totalorder %s11, 0
    %p52 = por %p50, %p51
    %p53 = scmp.ne.s32.totalorder %s45, %s47
    %p54 = scmp.eq.s32.totalorder %s16, 1
    %p55 = por %p53, %p54
    %p56 = scmp.ne.s32.totalorder %s47, %s48
    %p57 = scmp.eq.s32.totalorder %s16, 0
    %p58 = por %p56, %p57
    %p59 = scmp.ne.s32.totalorder %s47, %s48
    %p60 = scmp.eq.s32.totalorder %s17, 1
    %p61 = por %p59, %p60
    %p63 = scmp.ne.s32.totalorder %s48, %s62
    %p64 = scmp.eq.s32.totalorder %s17, 0
    %p65 = por %p63, %p64
    %s67 = sadd.s32 %s66, 1
    %p70 = scmp.eq.s32.totalorder %s11, 1
    %p71 = scmp.ne.s32.totalorder %s66, %s68
    %p72 = scmp.eq.s32.totalorder %s11, 0
    %p73 = por %p71, %p72
    %p74 = scmp.ne.s32.totalorder %s66, %s68
    %p75 = scmp.eq.s32.totalorder %s16, 1
    %p76 = por %p74, %p75
    %p77 = scmp.ne.s32.totalorder %s68, %s69
    %p78 = scmp.eq.s32.totalorder %s16, 0
    %p79 = por %p77, %p78
    %p80 = scmp.ne.s32.totalorder %s68, %s69
    %p81 = scmp.eq.s32.totalorder %s17, 1
    %p82 = por %p80, %p81
    %p84 = scmp.ne.s32.totalorder %s69, %s83
    %p85 = scmp.eq.s32.totalorder %s17, 0
    %p86 = por %p84, %p85
    %s88 = sadd.s32 %s87, 1
    %p91 = scmp.eq.s32.totalorder %s11, 1
    %p92 = scmp.ne.s32.totalorder %s87, %s89
    %p93 = scmp.eq.s32.totalorder %s11, 0
    %p94 = por %p92, %p93
    %p95 = scmp.ne.s32.totalorder %s87, %s89
    %p96 = scmp.eq.s32.totalorder %s16, 1
    %p97 = por %p95, %p96
    %p98 = scmp.ne.s32.totalorder %s89, %s90
    %p99 = scmp.eq.s32.totalorder %s16, 0
    %p100 = por %p98, %p99
    %p101 = scmp.ne.s32.totalorder %s89, %s90
    %p102 = scmp.eq.s32.totalorder %s17, 1
    %p103 = por %p101, %p102
    %p105 = scmp.ne.s32.totalorder %s90, %s104
    %p106 = scmp.eq.s32.totalorder %s17, 0
    %p107 = por %p105, %p106
    %s109 = sadd.s32 %s108, 1
    %p112 = scmp.eq.s32.totalorder %s11, 1
    %p113 = scmp.ne.s32.totalorder %s108, %s110
    %p114 = scmp.eq.s32.totalorder %s11, 0
    %p115 = por %p113, %p114
    %p116 = scmp.ne.s32.totalorder %s108, %s110
    %p117 = scmp.eq.s32.totalorder %s16, 1
    %p118 = por %p116, %p117
    %p119 = scmp.ne.s32.totalorder %s110, %s111
    %p120 = scmp.eq.s32.totalorder %s16, 0
    %p121 = por %p119, %p120
    %p122 = scmp.ne.s32.totalorder %s110, %s111
    %p123 = scmp.eq.s32.totalorder %s17, 1
    %p124 = por %p122, %p123
    %p126 = scmp.ne.s32.totalorder %s111, %s125
    %p127 = scmp.eq.s32.totalorder %s17, 0
    %p128 = por %p126, %p127
    %s129 = ssub.s32 %s11, %s18
    %p130 = scmp.eq.s32.totalorder %s129, 0
    %s132 = sadd.s32 %s131, 1
    %s133 = scalar_select %p130, %s131, %s132
    %p136 = pneg %p130
    %p137 = scmp.eq.s32.totalorder %s11, 1
    %p138 = por %p136, %p137
    %p139 = scmp.ne.s32.totalorder %s131, %s134
    %p140 = scmp.eq.s32.totalorder %s11, 0
    %p141 = por %p139, %p140
    %p142 = scmp.ne.s32.totalorder %s131, %s134
    %p143 = scmp.eq.s32.totalorder %s16, 1
    %p144 = por %p142, %p143
    %p145 = scmp.ne.s32.totalorder %s134, %s135
    %p146 = scmp.eq.s32.totalorder %s16, 0
    %p147 = por %p145, %p146
    %p148 = scmp.ne.s32.totalorder %s134, %s135
    %p149 = scmp.eq.s32.totalorder %s17, 1
    %p150 = por %p148, %p149
    %p152 = scmp.ne.s32.totalorder %s135, %s151
    %p153 = scmp.eq.s32.totalorder %s17, 0
    %p154 = por %p152, %p153
    %p155 = scmp.le.s32.totalorder 1, %s11
    %p156 = scmp.lt.s32.totalorder %s11, 3
    %p157 = pnand %p155, %p156
    %p158 = pneg %p157
    // Predicated region
    $region9: #{tpu_custom_call.1} parent=5 // pred_check
      _
    $region10: #{tpu_custom_call.1} parent=5 // pred_check_branch
      %160 = sbr.rel (%p157) target = $region12
    $region11: #{tpu_custom_call.1} parent=5 // pred_region
      %s161 = ssub.s32 %s11, 1
      // Predicated region
      $region13: #{tpu_custom_call.1} parent=11 // pred_check
        %p162 = pneg %p58
      $region14: #{tpu_custom_call.1} parent=11 // pred_check_branch
        %164 = sbr.rel (%p162) target = $region16
      $region15: #{tpu_custom_call.1} parent=11 // pred_region
        _
      $region16: #{tpu_custom_call.1} parent=11 // pred_fallthru
        _
      // Predicated region
      $region17: #{tpu_custom_call.1} parent=11 // pred_check
        %p165 = pneg %p79
      $region18: #{tpu_custom_call.1} parent=11 // pred_check_branch
        %167 = sbr.rel (%p165) target = $region20
      $region19: #{tpu_custom_call.1} parent=11 // pred_region
        _
      $region20: #{tpu_custom_call.1} parent=11 // pred_fallthru
        _
      // Predicated region
      $region21: #{tpu_custom_call.1} parent=11 // pred_check
        %p168 = pneg %p100
      $region22: #{tpu_custom_call.1} parent=11 // pred_check_branch
        %170 = sbr.rel (%p168) target = $region24
      $region23: #{tpu_custom_call.1} parent=11 // pred_region
        _
      $region24: #{tpu_custom_call.1} parent=11 // pred_fallthru
        _
      // Predicated region
      $region25: #{tpu_custom_call.1} parent=11 // pred_check
        %p171 = pneg %p121
      $region26: #{tpu_custom_call.1} parent=11 // pred_check_branch
        %173 = sbr.rel (%p171) target = $region28
      $region27: #{tpu_custom_call.1} parent=11 // pred_region
        _
      $region28: #{tpu_custom_call.1} parent=11 // pred_fallthru
        _
    $region12: #{tpu_custom_call.1} parent=5 // pred_fallthru
      _
    %p174 = scmp.lt.s32.totalorder %s11, 2
    // Predicated region
    $region29: #{tpu_custom_call.1} parent=5 // pred_check
      %p175 = pneg %p174
    $region30: #{tpu_custom_call.1} parent=5 // pred_check_branch
      %177 = sbr.rel (%p175) target = $region32
    $region31: #{tpu_custom_call.1} parent=5 // pred_region
      // Predicated region
      $region33: #{tpu_custom_call.1} parent=31 // pred_check
        %p178 = pneg %p31
      $region34: #{tpu_custom_call.1} parent=31 // pred_check_branch
        %180 = sbr.rel (%p178) target = $region36
      $region35: #{tpu_custom_call.1} parent=31 // pred_region
        %s181 = smul.u32 16, %s11
        %p182 = scmp.lt.s32.totalorder %s181, 31
        %s183 = scalar_select %p182, %s181, 31
        %s184 = smul.addr %s183, 8
        %s185 = scalar_lea.vmem %s0, %s184
        %s186 = smul.u32 16, %s11
      $region36: #{tpu_custom_call.1} parent=31 // pred_fallthru
        _
    $region32: #{tpu_custom_call.1} parent=5 // pred_fallthru
      _
    %p187 = scmp.le.s32.totalorder 1, %s11
    %p188 = scmp.lt.s32.totalorder %s11, 3
    %p189 = pnand %p187, %p188
    %p190 = pneg %p189
    // Predicated region
    $region37: #{tpu_custom_call.1} parent=5 // pred_check
      _
    $region38: #{tpu_custom_call.1} parent=5 // pred_check_branch
      %192 = sbr.rel (%p189) target = $region40
    $region39: #{tpu_custom_call.1} parent=5 // pred_region
      %s193 = ssub.s32 %s11, 1
      %s194 = smul.u32 16, %s16
      %p195 = scmp.lt.s32.totalorder %s194, 31
      %s196 = scalar_select %p195, %s194, 31
      %s197 = smul.addr %s196, 8
      %s198 = scalar_lea.vmem %s0, %s197
      %p199 = pneg %p37
      %p200 = pneg %p34
      %p201 = pneg %p58
      %p202 = pneg %p55
      %p203 = pneg %p79
      %p204 = pneg %p76
      %p205 = pneg %p100
      %p206 = pneg %p97
      %p207 = pneg %p121
      %p208 = pneg %p118
      %p209 = pneg %p147
      %p210 = pneg %p144
      %s211 = smul.u32 16, %s16
      %p212 = scmp.lt.s32.totalorder %s211, 31
      %s213 = scalar_select %p212, %s211, 31
      %s214 = smul.addr %s213, 8
      %s215 = scalar_lea.vmem %s5, %s214
      %s216 = smul.u32 16, %s16
      %p217 = scmp.lt.s32.totalorder %s216, 31
      %s218 = scalar_select %p217, %s216, 31
      %s219 = smul.addr %s218, 8
      %s220 = scalar_lea.vmem %s0, %s219
      %s221 = smul.u32 16, %s16
      %s222 = smul.u32 16, %s16
      %p223 = scmp.lt.s32.totalorder %s222, 31
      %s224 = scalar_select %p223, %s222, 31
      %s225 = smul.addr %s224, 8
      %s226 = scalar_lea.vmem %s5, %s225
      %s227 = smul.u32 16, %s16
      %v228 = vld [vmem:[%s220] sm:$0xff]
      %v229 = vld [vmem:[%s220 + $0x8] sm:$0xff]
      %v230 = vld [vmem:[%s220 + $0x10] sm:$0xff]
      %v231 = vld [vmem:[%s220 + $0x18] sm:$0xff]
      %v232 = vld [vmem:[%s220 + $0x20] sm:$0xff]
      %v233 = vld [vmem:[%s220 + $0x28] sm:$0xff]
      %v234 = vld [vmem:[%s220 + $0x30] sm:$0xff]
      %v235 = vld [vmem:[%s220 + $0x38] sm:$0xff]
      %v236 = vld [vmem:[%s220 + $0x40] sm:$0xff]
      %v237 = vld [vmem:[%s220 + $0x48] sm:$0xff]
      %v238 = vld [vmem:[%s220 + $0x50] sm:$0xff]
      %v239 = vld [vmem:[%s220 + $0x58] sm:$0xff]
      %v240 = vld [vmem:[%s220 + $0x60] sm:$0xff]
      %v241 = vld [vmem:[%s220 + $0x68] sm:$0xff]
      %v242 = vld [vmem:[%s220 + $0x70] sm:$0xff]
      %v243 = vld [vmem:[%s220 + $0x78] sm:$0xff]
      %v244 = vld [vmem:[%s1] sm:$0xf]
      %v245 = vld [vmem:[%s2] sm:$0x1]
      %v247 = vlaneseq
      %v248 = vshrl.u32 %v247, 7
      %v249 = vsub.s32 0, %v248
      %v250 = vrot.slane %v245, %v249
      %vm252 = vcmask 31744
      %v254 = vsel %vm252, %v228, 0
      %v257 = vsel %vm252, %v229, 0
      %v260 = vsel %vm252, %v230, 0
      %v263 = vsel %vm252, %v231, 0
      %v266 = vsel %vm252, %v232, 0
      %v269 = vsel %vm252, %v233, 0
      %v272 = vsel %vm252, %v234, 0
      %v275 = vsel %vm252, %v235, 0
      %v278 = vsel %vm252, %v236, 0
      %v281 = vsel %vm252, %v237, 0
      %v284 = vsel %vm252, %v238, 0
      %v287 = vsel %vm252, %v239, 0
      %v290 = vsel %vm252, %v240, 0
      %v293 = vsel %vm252, %v241, 0
      %v296 = vsel %vm252, %v242, 0
      %v299 = vsel %vm252, %v243, 0
      %vm301 = vcmask 1043456
      %v303 = vsel %vm301, %v244, 0
      %305 = vmatprep.subr.mxu0 0.0
      %306 = vmatpush1.msra.mxu0 %v303
      %307 = vmatprep.subr.mxu0 0.0
      %308 = vmatpush1.msra.mxu0 0.0
      %309 = vmatprep.subr.mxu0 0.0
      %310 = vmatpush1.msra.mxu0 0.0
      %311 = vmatprep.subr.mxu0 0.0
      %312 = vmatpush1.msra.mxu0 0.0
      %313 = vmatprep.subr.mxu0 0.0
      %314 = vmatpush1.msra.mxu0 0.0
      %315 = vmatprep.subr.mxu0 0.0
      %316 = vmatpush1.msra.mxu0 0.0
      %317 = vmatprep.subr.mxu0 0.0
      %318 = vmatpush1.msra.mxu0 0.0
      %319 = vmatprep.subr.mxu0 0.0
      %320 = vmatpush1.msra.mxu0 0.0
      %321 = vmatprep.subr.mxu0 0.0
      %322 = vmatpush1.msra.mxu0 0.0
      %323 = vmatprep.subr.mxu0 0.0
      %324 = vmatpush1.msra.mxu0 0.0
      %325 = vmatprep.subr.mxu0 0.0
      %326 = vmatpush1.msra.mxu0 0.0
      %327 = vmatprep.subr.mxu0 0.0
      %328 = vmatpush1.msra.mxu0 0.0
      %329 = vmatprep.subr.mxu0 0.0
      %330 = vmatpush1.msra.mxu0 0.0
      %331 = vmatprep.subr.mxu0 0.0
      %332 = vmatpush1.msra.mxu0 0.0
      %333 = vmatprep.subr.mxu0 0.0
      %334 = vmatpush1.msra.mxu0 0.0
      %335 = vmatprep.subr.mxu0 0.0
      %336 = vmatpush1.msra.mxu0 0.0
      %337 = vmatprep.subr.mxu0 0.0
      %338 = vmatpush1.msra.mxu0 0.0
      %339 = vmatprep.subr.mxu0 0.0
      %340 = vmatpush1.msra.mxu0 0.0
      %341 = vmatprep.subr.mxu0 0.0
      %342 = vmatpush1.msra.mxu0 0.0
      %343 = vmatprep.subr.mxu0 0.0
      %344 = vmatpush1.msra.mxu0 0.0
      %345 = vmatprep.subr.mxu0 0.0
      %346 = vmatpush1.msra.mxu0 0.0
      %347 = vmatprep.subr.mxu0 0.0
      %348 = vmatpush1.msra.mxu0 0.0
      %349 = vmatprep.subr.mxu0 0.0
      %350 = vmatpush1.msra.mxu0 0.0
      %351 = vmatprep.subr.mxu0 0.0
      %352 = vmatpush1.msra.mxu0 0.0
      %353 = vmatprep.subr.mxu0 0.0
      %354 = vmatpush1.msra.mxu0 0.0
      %355 = vmatprep.subr.mxu0 0.0
      %356 = vmatpush1.msra.mxu0 0.0
      %357 = vmatprep.subr.mxu0 0.0
      %358 = vmatpush1.msra.mxu0 0.0
      %359 = vmatprep.subr.mxu0 0.0
      %360 = vmatpush1.msra.mxu0 0.0
      %361 = vmatprep.subr.mxu0 0.0
      %362 = vmatpush1.msra.mxu0 0.0
      %363 = vmatprep.subr.mxu0 0.0
      %364 = vmatpush1.msra.mxu0 0.0
      %365 = vmatprep.subr.mxu0 0.0
      %366 = vmatpush1.msra.mxu0 0.0
      %367 = vmatprep.subr.mxu0 0.0
      %368 = vmatpush1.msra.mxu0 0.0
      %369 = vmatprep.mubr.f32.mxu0 0.0
      %370 = vmatmul.mubr.f32.gmra.mrb[0].mxu0 %v254
      %v371 = vpop.f32.mrb[0].mxu0
      %v372 = vadd.f32 %v250, %v371
      %v373 = vpop.f32.mrb[0].mxu0
      %374 = vmatprep.mubr.f32.mxu0 0.0
      %375 = vmatmul.mubr.f32.gmra.mrb[0].mxu0 %v257
      %v376 = vpop.f32.mrb[0].mxu0
      %v377 = vadd.f32 %v250, %v376
      %v378 = vpop.f32.mrb[0].mxu0
      %379 = vmatprep.mubr.f32.mxu0 0.0
      %380 = vmatmul.mubr.f32.gmra.mrb[0].mxu0 %v260
      %v381 = vpop.f32.mrb[0].mxu0
      %v382 = vadd.f32 %v250, %v381
      %v383 = vpop.f32.mrb[0].mxu0
      %384 = vmatprep.mubr.f32.mxu0 0.0
      %385 = vmatmul.mubr.f32.gmra.mrb[0].mxu0 %v263
      %v386 = vpop.f32.mrb[0].mxu0
      %v387 = vadd.f32 %v250, %v386
      %v388 = vpop.f32.mrb[0].mxu0
      %389 = vmatprep.mubr.f32.mxu0 0.0
      %390 = vmatmul.mubr.f32.gmra.mrb[0].mxu0 %v266
      %v391 = vpop.f32.mrb[0].mxu0
      %v392 = vadd.f32 %v250, %v391
      %v393 = vpop.f32.mrb[0].mxu0
      %394 = vmatprep.mubr.f32.mxu0 0.0
      %395 = vmatmul.mubr.f32.gmra.mrb[0].mxu0 %v269
      %v396 = vpop.f32.mrb[0].mxu0
      %v397 = vadd.f32 %v250, %v396
      %v398 = vpop.f32.mrb[0].mxu0
      %399 = vmatprep.mubr.f32.mxu0 0.0
      %400 = vmatmul.mubr.f32.gmra.mrb[0].mxu0 %v272
      %v401 = vpop.f32.mrb[0].mxu0
      %v402 = vadd.f32 %v250, %v401
      %v403 = vpop.f32.mrb[0].mxu0
      %404 = vmatprep.mubr.f32.mxu0 0.0
      %405 = vmatmul.mubr.f32.gmra.mrb[0].mxu0 %v275
      %v406 = vpop.f32.mrb[0].mxu0
      %v407 = vadd.f32 %v250, %v406
      %v408 = vpop.f32.mrb[0].mxu0
      %409 = vmatprep.mubr.f32.mxu0 0.0
      %410 = vmatmul.mubr.f32.gmra.mrb[0].mxu0 %v278
      %v411 = vpop.f32.mrb[0].mxu0
      %v412 = vadd.f32 %v250, %v411
      %v413 = vpop.f32.mrb[0].mxu0
      %414 = vmatprep.mubr.f32.mxu0 0.0
      %415 = vmatmul.mubr.f32.gmra.mrb[0].mxu0 %v281
      %v416 = vpop.f32.mrb[0].mxu0
      %v417 = vadd.f32 %v250, %v416
      %v418 = vpop.f32.mrb[0].mxu0
      %419 = vmatprep.mubr.f32.mxu0 0.0
      %420 = vmatmul.mubr.f32.gmra.mrb[0].mxu0 %v284
      %v421 = vpop.f32.mrb[0].mxu0
      %v422 = vadd.f32 %v250, %v421
      %v423 = vpop.f32.mrb[0].mxu0
      %424 = vmatprep.mubr.f32.mxu0 0.0
      %425 = vmatmul.mubr.f32.gmra.mrb[0].mxu0 %v287
      %v426 = vpop.f32.mrb[0].mxu0
      %v427 = vadd.f32 %v250, %v426
      %v428 = vpop.f32.mrb[0].mxu0
      %429 = vmatprep.mubr.f32.mxu0 0.0
      %430 = vmatmul.mubr.f32.gmra.mrb[0].mxu0 %v290
      %v431 = vpop.f32.mrb[0].mxu0
      %v432 = vadd.f32 %v250, %v431
      %v433 = vpop.f32.mrb[0].mxu0
      %434 = vmatprep.mubr.f32.mxu0 0.0
      %435 = vmatmul.mubr.f32.gmra.mrb[0].mxu0 %v293
      %v436 = vpop.f32.mrb[0].mxu0
      %v437 = vadd.f32 %v250, %v436
      %v438 = vpop.f32.mrb[0].mxu0
      %439 = vmatprep.mubr.f32.mxu0 0.0
      %440 = vmatmul.mubr.f32.gmra.mrb[0].mxu0 %v296
      %v441 = vpop.f32.mrb[0].mxu0
      %v442 = vadd.f32 %v250, %v441
      %v443 = vpop.f32.mrb[0].mxu0
      %444 = vmatprep.mubr.f32.mxu0 0.0
      %445 = vmatmul.mubr.f32.gmra.mrb[0].mxu0 %v299
      %v446 = vpop.f32.mrb[0].mxu0
      %v447 = vadd.f32 %v250, %v446
      %v448 = vpop.f32.mrb[0].mxu0
      %449 = vdwg.mxu0
      %v450 = vmax.f32 %v372, 0.0
      %v451 = vmax.f32 %v377, 0.0
      %v452 = vmax.f32 %v382, 0.0
      %v453 = vmax.f32 %v387, 0.0
      %v454 = vmax.f32 %v392, 0.0
      %v455 = vmax.f32 %v397, 0.0
      %v456 = vmax.f32 %v402, 0.0
      %v457 = vmax.f32 %v407, 0.0
      %v458 = vmax.f32 %v412, 0.0
      %v459 = vmax.f32 %v417, 0.0
      %v460 = vmax.f32 %v422, 0.0
      %v461 = vmax.f32 %v427, 0.0
      %v462 = vmax.f32 %v432, 0.0
      %v463 = vmax.f32 %v437, 0.0
      %v464 = vmax.f32 %v442, 0.0
      %v465 = vmax.f32 %v447, 0.0
      %v466 = vld [vmem:[%s3] sm:$0xff]
      %v467 = vld [vmem:[%s3 + $0x8] sm:$0xff]
      %v468 = vld [vmem:[%s3 + $0x10] sm:$0xff]
      %v469 = vld [vmem:[%s3 + $0x18] sm:$0xff]
      %v470 = vld [vmem:[%s4] sm:$0x1]
      %v472 = vlaneseq
      %v473 = vshrl.u32 %v472, 7
      %v474 = vsub.s32 0, %v473
      %v475 = vrot.slane %v470, %v474
      %vm477 = vcmask 261120
      %v479 = vsel %vm477, %v450, 0
      %v482 = vsel %vm477, %v451, 0
      %v485 = vsel %vm477, %v452, 0
      %v488 = vsel %vm477, %v453, 0
      %v491 = vsel %vm477, %v454, 0
      %v494 = vsel %vm477, %v455, 0
      %v497 = vsel %vm477, %v456, 0
      %v500 = vsel %vm477, %v457, 0
      %v503 = vsel %vm477, %v458, 0
      %v506 = vsel %vm477, %v459, 0
      %v509 = vsel %vm477, %v460, 0
      %v512 = vsel %vm477, %v461, 0
      %v515 = vsel %vm477, %v462, 0
      %v518 = vsel %vm477, %v463, 0
      %v521 = vsel %vm477, %v464, 0
      %v524 = vsel %vm477, %v465, 0
      %526 = vmatprep.subr.mxu0 0.0
      %527 = vmatpush1.msra.mxu0 %v466
      %528 = vmatprep.subr.mxu0 0.0
      %529 = vmatpush1.msra.mxu0 %v467
      %530 = vmatprep.subr.mxu0 0.0
      %531 = vmatpush1.msra.mxu0 %v468
      %532 = vmatprep.subr.mxu0 0.0
      %533 = vmatpush1.msra.mxu0 %v469
      %534 = vmatprep.subr.mxu0 0.0
      %535 = vmatpush1.msra.mxu0 0.0
      %536 = vmatprep.subr.mxu0 0.0
      %537 = vmatpush1.msra.mxu0 0.0
      %538 = vmatprep.subr.mxu0 0.0
      %539 = vmatpush1.msra.mxu0 0.0
      %540 = vmatprep.subr.mxu0 0.0
      %541 = vmatpush1.msra.mxu0 0.0
      %542 = vmatprep.subr.mxu0 0.0
      %543 = vmatpush1.msra.mxu0 0.0
      %544 = vmatprep.subr.mxu0 0.0
      %545 = vmatpush1.msra.mxu0 0.0
      %546 = vmatprep.subr.mxu0 0.0
      %547 = vmatpush1.msra.mxu0 0.0
      %548 = vmatprep.subr.mxu0 0.0
      %549 = vmatpush1.msra.mxu0 0.0
      %550 = vmatprep.subr.mxu0 0.0
      %551 = vmatpush1.msra.mxu0 0.0
      %552 = vmatprep.subr.mxu0 0.0
      %553 = vmatpush1.msra.mxu0 0.0
      %554 = vmatprep.subr.mxu0 0.0
      %555 = vmatpush1.msra.mxu0 0.0
      %556 = vmatprep.subr.mxu0 0.0
      %557 = vmatpush1.msra.mxu0 0.0
      %558 = vmatprep.subr.mxu0 0.0
      %559 = vmatpush1.msra.mxu0 0.0
      %560 = vmatprep.subr.mxu0 0.0
      %561 = vmatpush1.msra.mxu0 0.0
      %562 = vmatprep.subr.mxu0 0.0
      %563 = vmatpush1.msra.mxu0 0.0
      %564 = vmatprep.subr.mxu0 0.0
      %565 = vmatpush1.msra.mxu0 0.0
      %566 = vmatprep.subr.mxu0 0.0
      %567 = vmatpush1.msra.mxu0 0.0
      %568 = vmatprep.subr.mxu0 0.0
      %569 = vmatpush1.msra.mxu0 0.0
      %570 = vmatprep.subr.mxu0 0.0
      %571 = vmatpush1.msra.mxu0 0.0
      %572 = vmatprep.subr.mxu0 0.0
      %573 = vmatpush1.msra.mxu0 0.0
      %574 = vmatprep.subr.mxu0 0.0
      %575 = vmatpush1.msra.mxu0 0.0
      %576 = vmatprep.subr.mxu0 0.0
      %577 = vmatpush1.msra.mxu0 0.0
      %578 = vmatprep.subr.mxu0 0.0
      %579 = vmatpush1.msra.mxu0 0.0
      %580 = vmatprep.subr.mxu0 0.0
      %581 = vmatpush1.msra.mxu0 0.0
      %582 = vmatprep.subr.mxu0 0.0
      %583 = vmatpush1.msra.mxu0 0.0
      %584 = vmatprep.subr.mxu0 0.0
      %585 = vmatpush1.msra.mxu0 0.0
      %586 = vmatprep.subr.mxu0 0.0
      %587 = vmatpush1.msra.mxu0 0.0
      %588 = vmatprep.subr.mxu0 0.0
      %589 = vmatpush1.msra.mxu0 0.0
      %590 = vmatprep.mubr.f32.mxu0 0.0
      %591 = vmatmul.mubr.f32.gmra.mrb[0].mxu0 %v479
      %v592 = vpop.f32.mrb[0].mxu0
      %v593 = vadd.f32 %v475, %v592
      %v594 = vpop.f32.mrb[0].mxu0
      %595 = vmatprep.mubr.f32.mxu0 0.0
      %596 = vmatmul.mubr.f32.gmra.mrb[0].mxu0 %v482
      %v597 = vpop.f32.mrb[0].mxu0
      %v598 = vadd.f32 %v475, %v597
      %v599 = vpop.f32.mrb[0].mxu0
      %600 = vmatprep.mubr.f32.mxu0 0.0
      %601 = vmatmul.mubr.f32.gmra.mrb[0].mxu0 %v485
      %v602 = vpop.f32.mrb[0].mxu0
      %v603 = vadd.f32 %v475, %v602
      %v604 = vpop.f32.mrb[0].mxu0
      %605 = vmatprep.mubr.f32.mxu0 0.0
      %606 = vmatmul.mubr.f32.gmra.mrb[0].mxu0 %v488
      %v607 = vpop.f32.mrb[0].mxu0
      %v608 = vadd.f32 %v475, %v607
      %v609 = vpop.f32.mrb[0].mxu0
      %610 = vmatprep.mubr.f32.mxu0 0.0
      %611 = vmatmul.mubr.f32.gmra.mrb[0].mxu0 %v491
      %v612 = vpop.f32.mrb[0].mxu0
      %v613 = vadd.f32 %v475, %v612
      %v614 = vpop.f32.mrb[0].mxu0
      %615 = vmatprep.mubr.f32.mxu0 0.0
      %616 = vmatmul.mubr.f32.gmra.mrb[0].mxu0 %v494
      %v617 = vpop.f32.mrb[0].mxu0
      %v618 = vadd.f32 %v475, %v617
      %v619 = vpop.f32.mrb[0].mxu0
      %620 = vmatprep.mubr.f32.mxu0 0.0
      %621 = vmatmul.mubr.f32.gmra.mrb[0].mxu0 %v497
      %v622 = vpop.f32.mrb[0].mxu0
      %v623 = vadd.f32 %v475, %v622
      %v624 = vpop.f32.mrb[0].mxu0
      %625 = vmatprep.mubr.f32.mxu0 0.0
      %626 = vmatmul.mubr.f32.gmra.mrb[0].mxu0 %v500
      %v627 = vpop.f32.mrb[0].mxu0
      %v628 = vadd.f32 %v475, %v627
      %v629 = vpop.f32.mrb[0].mxu0
      %630 = vmatprep.mubr.f32.mxu0 0.0
      %631 = vmatmul.mubr.f32.gmra.mrb[0].mxu0 %v503
      %v632 = vpop.f32.mrb[0].mxu0
      %v633 = vadd.f32 %v475, %v632
      %v634 = vpop.f32.mrb[0].mxu0
      %635 = vmatprep.mubr.f32.mxu0 0.0
      %636 = vmatmul.mubr.f32.gmra.mrb[0].mxu0 %v506
      %v637 = vpop.f32.mrb[0].mxu0
      %v638 = vadd.f32 %v475, %v637
      %v639 = vpop.f32.mrb[0].mxu0
      %640 = vmatprep.mubr.f32.mxu0 0.0
      %641 = vmatmul.mubr.f32.gmra.mrb[0].mxu0 %v509
      %v642 = vpop.f32.mrb[0].mxu0
      %v643 = vadd.f32 %v475, %v642
      %v644 = vpop.f32.mrb[0].mxu0
      %645 = vmatprep.mubr.f32.mxu0 0.0
      %646 = vmatmul.mubr.f32.gmra.mrb[0].mxu0 %v512
      %v647 = vpop.f32.mrb[0].mxu0
      %v648 = vadd.f32 %v475, %v647
      %v649 = vpop.f32.mrb[0].mxu0
      %650 = vmatprep.mubr.f32.mxu0 0.0
      %651 = vmatmul.mubr.f32.gmra.mrb[0].mxu0 %v515
      %v652 = vpop.f32.mrb[0].mxu0
      %v653 = vadd.f32 %v475, %v652
      %v654 = vpop.f32.mrb[0].mxu0
      %655 = vmatprep.mubr.f32.mxu0 0.0
      %656 = vmatmul.mubr.f32.gmra.mrb[0].mxu0 %v518
      %v657 = vpop.f32.mrb[0].mxu0
      %v658 = vadd.f32 %v475, %v657
      %v659 = vpop.f32.mrb[0].mxu0
      %660 = vmatprep.mubr.f32.mxu0 0.0
      %661 = vmatmul.mubr.f32.gmra.mrb[0].mxu0 %v521
      %v662 = vpop.f32.mrb[0].mxu0
      %v663 = vadd.f32 %v475, %v662
      %v664 = vpop.f32.mrb[0].mxu0
      %665 = vmatprep.mubr.f32.mxu0 0.0
      %666 = vmatmul.mubr.f32.gmra.mrb[0].mxu0 %v524
      %v667 = vpop.f32.mrb[0].mxu0
      %v668 = vadd.f32 %v475, %v667
      %v669 = vpop.f32.mrb[0].mxu0
      %670 = vdwg.mxu0
      %vm671 = vcmask 15360
      %672 = vst.msk [vmem:[%s226] sm:$0xff] %vm671, %v593
      %673 = vst.msk [vmem:[%s226 + $0x8] sm:$0xff] %vm671, %v598
      %674 = vst.msk [vmem:[%s226 + $0x10] sm:$0xff] %vm671, %v603
      %675 = vst.msk [vmem:[%s226 + $0x18] sm:$0xff] %vm671, %v608
      %676 = vst.msk [vmem:[%s226 + $0x20] sm:$0xff] %vm671, %v613
      %677 = vst.msk [vmem:[%s226 + $0x28] sm:$0xff] %vm671, %v618
      %678 = vst.msk [vmem:[%s226 + $0x30] sm:$0xff] %vm671, %v623
      %679 = vst.msk [vmem:[%s226 + $0x38] sm:$0xff] %vm671, %v628
      %680 = vst.msk [vmem:[%s226 + $0x40] sm:$0xff] %vm671, %v633
      %681 = vst.msk [vmem:[%s226 + $0x48] sm:$0xff] %vm671, %v638
      %682 = vst.msk [vmem:[%s226 + $0x50] sm:$0xff] %vm671, %v643
      %683 = vst.msk [vmem:[%s226 + $0x58] sm:$0xff] %vm671, %v648
      %684 = vst.msk [vmem:[%s226 + $0x60] sm:$0xff] %vm671, %v653
      %685 = vst.msk [vmem:[%s226 + $0x68] sm:$0xff] %vm671, %v658
      %686 = vst.msk [vmem:[%s226 + $0x70] sm:$0xff] %vm671, %v663
      %687 = vst.msk [vmem:[%s226 + $0x78] sm:$0xff] %vm671, %v668
      %s688 = smul.u32 16, %s16
      %p689 = scmp.lt.s32.totalorder %s688, 31
      %s690 = scalar_select %p689, %s688, 31
      %s691 = smul.addr %s690, 8
      %s692 = scalar_lea.vmem %s5, %s691
      // Predicated region
      $region41: #{tpu_custom_call.1} parent=39 // pred_check
        %p693 = pneg %p144
      $region42: #{tpu_custom_call.1} parent=39 // pred_check_branch
        %695 = sbr.rel (%p693) target = $region44
      $region43: #{tpu_custom_call.1} parent=39 // pred_region
        %s696 = smul.u32 16, %s16
      $region44: #{tpu_custom_call.1} parent=39 // pred_fallthru
        _
    $region40: #{tpu_custom_call.1} parent=5 // pred_fallthru
      _
    %p697 = scmp.le.s32.totalorder 2, %s11
    // Predicated region
    $region45: #{tpu_custom_call.1} parent=5 // pred_check
      %p698 = pneg %p697
    $region46: #{tpu_custom_call.1} parent=5 // pred_check_branch
      %700 = sbr.rel (%p698) target = $region48
    $region47: #{tpu_custom_call.1} parent=5 // pred_region
      %s701 = ssub.s32 %s11, 2
      // Predicated region
      $region49: #{tpu_custom_call.1} parent=47 // pred_check
        %p702 = pneg %p150
      $region50: #{tpu_custom_call.1} parent=47 // pred_check_branch
        %704 = sbr.rel (%p702) target = $region52
      $region51: #{tpu_custom_call.1} parent=47 // pred_region
        %s705 = smul.u32 16, %s17
        %p706 = scmp.lt.s32.totalorder %s705, 31
        %s707 = scalar_select %p706, %s705, 31
        %s708 = smul.addr %s707, 8
        %s709 = scalar_lea.vmem %s5, %s708
      $region52: #{tpu_custom_call.1} parent=47 // pred_fallthru
        _
    $region48: #{tpu_custom_call.1} parent=5 // pred_fallthru
      _
  $region6: #{tpu_custom_call.1} parent=0 // loop_footer
    %s15 = sadd.s32 1, %s11
  $region7: #{tpu_custom_call.1} parent=0 // loop_footer_branch
    %10 = sbr.rel target = $region3
  $region8: #{tpu_custom_call.1} parent=0 // loop_exit
    _

</llo_original>
